<compile_context>
chip_gen: v7x
topology: tpu7x:2x2x1
jax: 0.10.0
libtpu: 0.0.40
codegen_flags: <defaults>
</compile_context>

<pallas_src>
import functools

import jax
import jax.numpy as jnp
from jax import lax
from jax.experimental import pallas as pl
from jax.experimental.pallas import tpu as pltpu


def _round_up(n, m):
    return ((n + m - 1) // m) * m


def _loss_kernel(x_ref, w_ref, lm_ref, tgt_ref, out_ref,
                 xn_ref, m_ref, l_ref, t_ref, *, eps, vocab_size, mask_vocab):
    # x_ref:   (tm, D)  input tokens (original dtype)
    # w_ref:   (1, D)   RMSNorm weight (f32)
    # lm_ref:  (tv, D)  lm_head weight tile, natural (V, D) layout, compute dtype
    # tgt_ref: (tm, 1)  int32 targets
    # out_ref: (tm, 1)  per-token loss (written once, at the last vocab step)
    # xn_ref:  (tm, D)  cached RMSNorm output (compute dtype)        -- scratch
    # m/l/t:   (tm, 1)  online-logsumexp running max / sum / target  -- scratch
    v = pl.program_id(1)
    nv = pl.num_programs(1)

    @pl.when(v == 0)
    def _init():
        xf = x_ref[...].astype(jnp.float32)                          # (tm, D)
        ms = jnp.mean(xf * xf, axis=-1, keepdims=True)               # (tm, 1)
        xn = xf * lax.rsqrt(ms + eps) * w_ref[...]                   # RMSNorm * weight
        xn_ref[...] = xn.astype(xn_ref.dtype)
        m_ref[...] = jnp.full(m_ref.shape, -jnp.inf, dtype=m_ref.dtype)
        l_ref[...] = jnp.zeros(l_ref.shape, dtype=l_ref.dtype)
        t_ref[...] = jnp.zeros(t_ref.shape, dtype=t_ref.dtype)

    # logits tile: (tm, tv) = xn (tm, D) @ W_tile (tv, D)^T, contracting D (MXU).
    logits = lax.dot_general(
        xn_ref[...], lm_ref[...],
        dimension_numbers=(((1,), (1,)), ((), ())),
        preferred_element_type=jnp.float32)                          # (tm, tv) f32

    tv = logits.shape[-1]
    col = lax.broadcasted_iota(jnp.int32, logits.shape, 1) + v * tv  # global vocab ids
    if mask_vocab:  # static: only emitted when the vocab was padded to a tile multiple
        logits = jnp.where(col < vocab_size, logits, -jnp.inf)

    # --- online logsumexp update ---
    m_prev = m_ref[...]
    m_new = jnp.maximum(m_prev, jnp.max(logits, axis=-1, keepdims=True))
    alpha = jnp.exp(m_prev - m_new)                                  # 0 on first tile
    l_ref[...] = alpha * l_ref[...] + jnp.sum(jnp.exp(logits - m_new),
                                              axis=-1, keepdims=True)
    m_ref[...] = m_new

    # --- target-logit gather fused into the same pass over this logits tile ---
    t_ref[...] = t_ref[...] + jnp.sum(
        jnp.where(col == tgt_ref[...], logits, 0.0), axis=-1, keepdims=True)

    @pl.when(v == nv - 1)
    def _finalize():
        lse = m_ref[...] + jnp.log(l_ref[...])                       # (tm, 1)
        out_ref[...] = lse - t_ref[...]                              # per-token NLL


def llama_classification_loss(x, targets, rms_weight, lm_weight, *,
                              eps=1e-5, tm=256, tv=512,
                              ignore_index=-100,
                              compute_dtype=jnp.bfloat16,
                              vmem_limit_bytes=None):
    """Cross-entropy loss of RMSNorm -> lm_head -> softmax (fused, never
    materializing the (B, S, V) logits).

    x: (B, S, D) float, targets: (B, S) int, rms_weight: (D,), lm_weight: (V, D).
    For very large D on v5e/v7x, pass a larger vmem_limit_bytes (e.g. 64 << 20)
    or a smaller tm / tv.
    """
    B, S, D = x.shape
    V, D2 = lm_weight.shape
    assert D == D2, (D, D2)
    N = B * S

    # Row tile: clamp to the (padded) problem size so toy shapes still work.
    tm = min(_round_up(tm, 8), _round_up(N, 8))
    n_pad = _round_up(N, tm)

    # Vocab tile: multiple of 128 (lane-dense logits); pad V up to a tile multiple.
    tv = _round_up(max(128, min(tv, _round_up(V, 128))), 128)
    v_pad = _round_up(V, tv)
    mask_vocab = (v_pad != V)

    x_flat = x.reshape(N, D)
    tgt_flat = targets.reshape(N).astype(jnp.int32)
    if n_pad != N:
        x_flat = jnp.pad(x_flat, ((0, n_pad - N), (0, 0)))
        tgt_flat = jnp.pad(tgt_flat, (0, n_pad - N),
                           constant_values=jnp.int32(ignore_index))
    tgt_2d = tgt_flat.reshape(n_pad, 1)

    w_rms = rms_weight.reshape(1, D).astype(jnp.float32)
    w_lm = lm_weight.astype(compute_dtype)           # (V, D), natural layout, no .T
    if v_pad != V:
        w_lm = jnp.pad(w_lm, ((0, v_pad - V), (0, 0)))

    kernel = functools.partial(_loss_kernel, eps=float(eps),
                               vocab_size=V, mask_vocab=mask_vocab)

    compiler_params = dict(dimension_semantics=("parallel", "arbitrary"))
    if vmem_limit_bytes is not None:
        compiler_params["vmem_limit_bytes"] = vmem_limit_bytes

    per_token = pl.pallas_call(
        kernel,
        out_shape=jax.ShapeDtypeStruct((n_pad, 1), jnp.float32),
        grid_spec=pltpu.PrefetchScalarGridSpec(
            num_scalar_prefetch=0,
            grid=(n_pad // tm, v_pad // tv),
            in_specs=[
                pl.BlockSpec((tm, D), lambda i, v: (i, 0)),   # x tokens (resident over v)
                pl.BlockSpec((1, D), lambda i, v: (0, 0)),    # RMSNorm weight
                pl.BlockSpec((tv, D), lambda i, v: (v, 0)),   # lm_head weight tile (V,D)
                pl.BlockSpec((tm, 1), lambda i, v: (i, 0)),   # targets
            ],
            out_specs=pl.BlockSpec((tm, 1), lambda i, v: (i, 0)),  # per-token loss
            scratch_shapes=[
                pltpu.VMEM((tm, D), compute_dtype),   # cached normalized x
                pltpu.VMEM((tm, 1), jnp.float32),     # running max m
                pltpu.VMEM((tm, 1), jnp.float32),     # running sum l
                pltpu.VMEM((tm, 1), jnp.float32),     # running target logit
            ],
        ),
        compiler_params=pltpu.CompilerParams(**compiler_params),
    )(x_flat, w_rms, w_lm, tgt_2d)

    per_token = per_token[:N, 0]
    valid = (targets.reshape(N) != ignore_index)
    per_token = jnp.where(valid, per_token, 0.0)
    count = jnp.maximum(jnp.sum(valid.astype(jnp.float32)), 1.0)
    return jnp.sum(per_token) / count                 # reduction='mean'


def _reference_loss(x, targets, rms_weight, lm_weight, *, eps=1e-5,
                    compute_dtype=jnp.float32):
    xf = x.astype(jnp.float32)
    xn = xf * lax.rsqrt(jnp.mean(xf * xf, axis=-1, keepdims=True) + eps)
    xn = xn * rms_weight.astype(jnp.float32)
    logits = jnp.dot(xn.astype(compute_dtype), lm_weight.astype(compute_dtype).T,
                     preferred_element_type=jnp.float32)
    lse = jax.scipy.special.logsumexp(logits, axis=-1)
    tl = jnp.take_along_axis(logits, targets[..., None], axis=-1)[..., 0]
    return jnp.mean(lse - tl)


# TODO(synk): the 'seq_2_seq' branch uses nn.AdaptiveLogSoftmaxWithLoss
# (hierarchical softmax with data-dependent clustering); only the default
# 'cross_entropy' path is implemented.

if __name__ == "__main__":
    key = jax.random.PRNGKey(0)
    k1, k2, k3, k4, k5, k6 = jax.random.split(key, 6)

    # --- Test 1: bf16 MXU path, vocab divisible by the tile -------------------
    B, S, D, V = 2, 8, 32, 256
    x = jax.random.normal(k1, (B, S, D), dtype=jnp.float32)
    targets = jax.random.randint(k2, (B, S), 0, V, dtype=jnp.int32)
    rms_weight = jnp.ones((D,), dtype=jnp.float32)
    lm_weight = jax.random.normal(k3, (V, D), dtype=jnp.float32) / jnp.sqrt(D)

    # tv=128 exercises the multi-tile online-logsumexp path at this toy vocab size.
    loss = llama_classification_loss(x, targets, rms_weight, lm_weight,
                                     eps=1e-5, tm=256, tv=128)
    loss = jax.block_until_ready(loss)

    ref_bf16 = _reference_loss(x, targets, rms_weight, lm_weight, eps=1e-5,
                               compute_dtype=jnp.bfloat16)
    ref_f32 = _reference_loss(x, targets, rms_weight, lm_weight, eps=1e-5,
                              compute_dtype=jnp.float32)
    assert jnp.allclose(loss, ref_bf16, rtol=2e-3, atol=2e-3), (loss, ref_bf16)
    assert jnp.allclose(loss, ref_f32, rtol=5e-2, atol=5e-2), (loss, ref_f32)

    # --- Test 2: odd shapes (row padding + vocab padding/masking), f32 path ---
    B2, S2, D2, V2 = 2, 5, 64, 250
    x2 = jax.random.normal(k4, (B2, S2, D2), dtype=jnp.float32)
    t2 = jax.random.randint(k5, (B2, S2), 0, V2, dtype=jnp.int32)
    rw2 = 1.0 + 0.1 * jax.random.normal(k6, (D2,), dtype=jnp.float32)
    lw2 = jax.random.normal(jax.random.PRNGKey(1), (V2, D2),
                            dtype=jnp.float32) / jnp.sqrt(D2)

    loss2 = llama_classification_loss(x2, t2, rw2, lw2, eps=1e-5, tm=256, tv=128,
                                      compute_dtype=jnp.float32)
    loss2 = jax.block_until_ready(loss2)
    ref2 = _reference_loss(x2, t2, rw2, lw2, eps=1e-5, compute_dtype=jnp.float32)
    assert jnp.allclose(loss2, ref2, rtol=3e-2, atol=3e-2), (loss2, ref2)

    print("KERNEL_OK")
</pallas_src>

<mosaic_0001>
module attributes {stable_mosaic.version = 11 : i64} {
  func.func @_loss_kernel(%arg0: i32, %arg1: i32, %arg2: memref<16x32xf32, #tpu.memory_space<vmem>>, %arg3: memref<1x32xf32, #tpu.memory_space<vmem>>, %arg4: memref<128x32xbf16, #tpu.memory_space<vmem>>, %arg5: memref<16x1xi32, #tpu.memory_space<vmem>>, %arg6: memref<16x1xf32, #tpu.memory_space<vmem>>, %arg7: memref<16x32xbf16, #tpu.memory_space<vmem>>, %arg8: memref<16x1xf32, #tpu.memory_space<vmem>>, %arg9: memref<16x1xf32, #tpu.memory_space<vmem>>, %arg10: memref<16x1xf32, #tpu.memory_space<vmem>>) attributes {dimension_semantics = [#tpu.dimension_semantics<parallel>, #tpu.dimension_semantics<arbitrary>], iteration_bounds = array<i64: 1, 2>, scalar_prefetch = 0 : i64, scratch_operands = 4 : i64, tpu.core_type = #tpu.core_type<tc>, window_params = [{transform_indices = @transform_0, window_bounds = array<i64: 16, 32>}, {pipeline_mode = #tpu.pipeline_mode<synchronous>, transform_indices = @transform_1, window_bounds = array<i64: 1, 32>}, {transform_indices = @transform_2, window_bounds = array<i64: 128, 32>}, {transform_indices = @transform_3, window_bounds = array<i64: 16, 1>}, {transform_indices = @transform_4, window_bounds = array<i64: 16, 1>}]} {
    %c0_i32 = arith.constant 0 : i32
    %0 = arith.cmpi eq, %arg1, %c0_i32 : i32
    %1 = arith.extui %0 : i1 to i32
    %c0_i32_0 = arith.constant 0 : i32
    %2 = arith.cmpi ne, %1, %c0_i32_0 : i32
    scf.if %2 {
      %c0_23 = arith.constant 0 : index
      %c0_24 = arith.constant 0 : index
      %39 = vector.load %arg2[%c0_23, %c0_24] : memref<16x32xf32, #tpu.memory_space<vmem>>, vector<16x32xf32>
      %40 = arith.mulf %39, %39 : vector<16x32xf32>
      %cst_25 = arith.constant dense<0.000000e+00> : vector<16xf32>
      %41 = vector.multi_reduction <add>, %40, %cst_25 [1] : vector<16x32xf32> to vector<16xf32>
      %42 = vector.shape_cast %41 : vector<16xf32> to vector<16x1xf32>
      %cst_26 = arith.constant 3.200000e+01 : f32
      %43 = vector.broadcast %cst_26 : f32 to vector<16x1xf32>
      %44 = arith.divf %42, %43 : vector<16x1xf32>
      %cst_27 = arith.constant 9.99999974E-6 : f32
      %45 = vector.broadcast %cst_27 : f32 to vector<16x1xf32>
      %46 = arith.addf %44, %45 : vector<16x1xf32>
      %47 = math.rsqrt %46 : vector<16x1xf32>
      %48 = vector.broadcast %47 : vector<16x1xf32> to vector<16x32xf32>
      %49 = arith.mulf %39, %48 : vector<16x32xf32>
      %c0_28 = arith.constant 0 : index
      %c0_29 = arith.constant 0 : index
      %50 = vector.load %arg3[%c0_28, %c0_29] : memref<1x32xf32, #tpu.memory_space<vmem>>, vector<1x32xf32>
      %51 = vector.broadcast %50 : vector<1x32xf32> to vector<16x32xf32>
      %52 = arith.mulf %49, %51 : vector<16x32xf32>
      %53 = arith.truncf %52 : vector<16x32xf32> to vector<16x32xbf16>
      %c0_30 = arith.constant 0 : index
      %c0_31 = arith.constant 0 : index
      %54 = vector.load %arg7[%c0_30, %c0_31] : memref<16x32xbf16, #tpu.memory_space<vmem>>, vector<16x32xbf16>
      tpu.vector_store %arg7[%c0_30, %c0_31], %53 {strides = array<i32>} : memref<16x32xbf16, #tpu.memory_space<vmem>>, vector<16x32xbf16>,
      %cst_32 = arith.constant 0xFF800000 : f32
      %55 = vector.broadcast %cst_32 : f32 to vector<16x1xf32>
      %c0_33 = arith.constant 0 : index
      %c0_34 = arith.constant 0 : index
      %56 = vector.load %arg8[%c0_33, %c0_34] : memref<16x1xf32, #tpu.memory_space<vmem>>, vector<16x1xf32>
      tpu.vector_store %arg8[%c0_33, %c0_34], %55 {strides = array<i32>} : memref<16x1xf32, #tpu.memory_space<vmem>>, vector<16x1xf32>,
      %cst_35 = arith.constant 0.000000e+00 : f32
      %57 = vector.broadcast %cst_35 : f32 to vector<16x1xf32>
      %c0_36 = arith.constant 0 : index
      %c0_37 = arith.constant 0 : index
      %58 = vector.load %arg9[%c0_36, %c0_37] : memref<16x1xf32, #tpu.memory_space<vmem>>, vector<16x1xf32>
      tpu.vector_store %arg9[%c0_36, %c0_37], %57 {strides = array<i32>} : memref<16x1xf32, #tpu.memory_space<vmem>>, vector<16x1xf32>,
      %cst_38 = arith.constant 0.000000e+00 : f32
      %59 = vector.broadcast %cst_38 : f32 to vector<16x1xf32>
      %c0_39 = arith.constant 0 : index
      %c0_40 = arith.constant 0 : index
      %60 = vector.load %arg10[%c0_39, %c0_40] : memref<16x1xf32, #tpu.memory_space<vmem>>, vector<16x1xf32>
      tpu.vector_store %arg10[%c0_39, %c0_40], %59 {strides = array<i32>} : memref<16x1xf32, #tpu.memory_space<vmem>>, vector<16x1xf32>,
    } else {
    }
    %c0 = arith.constant 0 : index
    %c0_1 = arith.constant 0 : index
    %3 = vector.load %arg7[%c0, %c0_1] : memref<16x32xbf16, #tpu.memory_space<vmem>>, vector<16x32xbf16>
    %c0_2 = arith.constant 0 : index
    %c0_3 = arith.constant 0 : index
    %4 = vector.load %arg4[%c0_2, %c0_3] : memref<128x32xbf16, #tpu.memory_space<vmem>>, vector<128x32xbf16>
    %cst = arith.constant dense<0.000000e+00> : vector<16x128xf32>
    %5 = tpu.matmul %3, %4, %cst {dimension_numbers = #tpu.dot_dimension_numbers<[1], [1], [0], [0], [0, 0, 1, 0], [], []>} : vector<16x32xbf16>, vector<128x32xbf16>, vector<16x128xf32> -> vector<16x128xf32>
    %6 = tpu.iota {dimensions = array<i32: 1>} : vector<16x128xi32>
    %c128_i32 = arith.constant 128 : i32
    %7 = arith.muli %arg1, %c128_i32 : i32
    %8 = vector.broadcast %7 : i32 to vector<16x128xi32>
    %9 = arith.addi %6, %8 : vector<16x128xi32>
    %c0_4 = arith.constant 0 : index
    %c0_5 = arith.constant 0 : index
    %10 = vector.load %arg8[%c0_4, %c0_5] : memref<16x1xf32, #tpu.memory_space<vmem>>, vector<16x1xf32>
    %cst_6 = arith.constant dense<0xFF800000> : vector<16xf32>
    %11 = vector.multi_reduction <maximumf>, %5, %cst_6 [1] : vector<16x128xf32> to vector<16xf32>
    %12 = vector.shape_cast %11 : vector<16xf32> to vector<16x1xf32>
    %13 = arith.maximumf %10, %12 : vector<16x1xf32>
    %14 = arith.subf %10, %13 : vector<16x1xf32>
    %15 = math.exp %14 : vector<16x1xf32>
    %c0_7 = arith.constant 0 : index
    %c0_8 = arith.constant 0 : index
    %16 = vector.load %arg9[%c0_7, %c0_8] : memref<16x1xf32, #tpu.memory_space<vmem>>, vector<16x1xf32>
    %17 = arith.mulf %15, %16 : vector<16x1xf32>
    %18 = vector.broadcast %13 : vector<16x1xf32> to vector<16x128xf32>
    %19 = arith.subf %5, %18 : vector<16x128xf32>
    %20 = math.exp %19 : vector<16x128xf32>
    %cst_9 = arith.constant dense<0.000000e+00> : vector<16xf32>
    %21 = vector.multi_reduction <add>, %20, %cst_9 [1] : vector<16x128xf32> to vector<16xf32>
    %22 = vector.shape_cast %21 : vector<16xf32> to vector<16x1xf32>
    %23 = arith.addf %17, %22 : vector<16x1xf32>
    %c0_10 = arith.constant 0 : index
    %c0_11 = arith.constant 0 : index
    %24 = vector.load %arg9[%c0_10, %c0_11] : memref<16x1xf32, #tpu.memory_space<vmem>>, vector<16x1xf32>
    tpu.vector_store %arg9[%c0_10, %c0_11], %23 {strides = array<i32>} : memref<16x1xf32, #tpu.memory_space<vmem>>, vector<16x1xf32>,
    %c0_12 = arith.constant 0 : index
    %c0_13 = arith.constant 0 : index
    %25 = vector.load %arg8[%c0_12, %c0_13] : memref<16x1xf32, #tpu.memory_space<vmem>>, vector<16x1xf32>
    tpu.vector_store %arg8[%c0_12, %c0_13], %13 {strides = array<i32>} : memref<16x1xf32, #tpu.memory_space<vmem>>, vector<16x1xf32>,
    %c0_14 = arith.constant 0 : index
    %c0_15 = arith.constant 0 : index
    %26 = vector.load %arg10[%c0_14, %c0_15] : memref<16x1xf32, #tpu.memory_space<vmem>>, vector<16x1xf32>
    %c0_16 = arith.constant 0 : index
    %c0_17 = arith.constant 0 : index
    %27 = vector.load %arg5[%c0_16, %c0_17] : memref<16x1xi32, #tpu.memory_space<vmem>>, vector<16x1xi32>
    %28 = vector.broadcast %27 : vector<16x1xi32> to vector<16x128xi32>
    %29 = arith.cmpi eq, %9, %28 : vector<16x128xi32>
    %cst_18 = arith.constant 0.000000e+00 : f32
    %30 = vector.broadcast %cst_18 : f32 to vector<16x128xf32>
    %31 = arith.select %29, %5, %30 : vector<16x128xi1>, vector<16x128xf32>
    %cst_19 = arith.constant dense<0.000000e+00> : vector<16xf32>
    %32 = vector.multi_reduction <add>, %31, %cst_19 [1] : vector<16x128xf32> to vector<16xf32>
    %33 = vector.shape_cast %32 : vector<16xf32> to vector<16x1xf32>
    %34 = arith.addf %26, %33 : vector<16x1xf32>
    %c0_20 = arith.constant 0 : index
    %c0_21 = arith.constant 0 : index
    %35 = vector.load %arg10[%c0_20, %c0_21] : memref<16x1xf32, #tpu.memory_space<vmem>>, vector<16x1xf32>
    tpu.vector_store %arg10[%c0_20, %c0_21], %34 {strides = array<i32>} : memref<16x1xf32, #tpu.memory_space<vmem>>, vector<16x1xf32>,
    %c1_i32 = arith.constant 1 : i32
    %36 = arith.cmpi eq, %arg1, %c1_i32 : i32
    %37 = arith.extui %36 : i1 to i32
    %c0_i32_22 = arith.constant 0 : i32
    %38 = arith.cmpi ne, %37, %c0_i32_22 : i32
    scf.if %38 {
      %c0_23 = arith.constant 0 : index
      %c0_24 = arith.constant 0 : index
      %39 = vector.load %arg8[%c0_23, %c0_24] : memref<16x1xf32, #tpu.memory_space<vmem>>, vector<16x1xf32>
      %c0_25 = arith.constant 0 : index
      %c0_26 = arith.constant 0 : index
      %40 = vector.load %arg9[%c0_25, %c0_26] : memref<16x1xf32, #tpu.memory_space<vmem>>, vector<16x1xf32>
      %41 = math.log %40 : vector<16x1xf32>
      %42 = arith.addf %39, %41 : vector<16x1xf32>
      %c0_27 = arith.constant 0 : index
      %c0_28 = arith.constant 0 : index
      %43 = vector.load %arg10[%c0_27, %c0_28] : memref<16x1xf32, #tpu.memory_space<vmem>>, vector<16x1xf32>
      %44 = arith.subf %42, %43 : vector<16x1xf32>
      %c0_29 = arith.constant 0 : index
      %c0_30 = arith.constant 0 : index
      %45 = vector.load %arg6[%c0_29, %c0_30] : memref<16x1xf32, #tpu.memory_space<vmem>>, vector<16x1xf32>
      tpu.vector_store %arg6[%c0_29, %c0_30], %44 {strides = array<i32>} : memref<16x1xf32, #tpu.memory_space<vmem>>, vector<16x1xf32>,
    } else {
    }
    return
  }
  func.func @transform_0(%arg0: i32, %arg1: i32) -> (i32, i32) {
    %c0_i32 = arith.constant 0 : i32
    %c0_i32_0 = arith.constant 0 : i32
    return %arg0, %c0_i32 : i32, i32
  }
  func.func @transform_1(%arg0: i32, %arg1: i32) -> (i32, i32) {
    %c0_i32 = arith.constant 0 : i32
    %c0_i32_0 = arith.constant 0 : i32
    %c0_i32_1 = arith.constant 0 : i32
    return %c0_i32, %c0_i32_0 : i32, i32
  }
  func.func @transform_2(%arg0: i32, %arg1: i32) -> (i32, i32) {
    %c0_i32 = arith.constant 0 : i32
    %c0_i32_0 = arith.constant 0 : i32
    return %arg1, %c0_i32 : i32, i32
  }
  func.func @transform_3(%arg0: i32, %arg1: i32) -> (i32, i32) {
    %c0_i32 = arith.constant 0 : i32
    %c0_i32_0 = arith.constant 0 : i32
    return %arg0, %c0_i32 : i32, i32
  }
  func.func @transform_4(%arg0: i32, %arg1: i32) -> (i32, i32) {
    %c0_i32 = arith.constant 0 : i32
    %c0_i32_0 = arith.constant 0 : i32
    return %arg0, %c0_i32 : i32, i32
  }
}

</mosaic_0001>

<llo_original>
// kernel: tpu_custom_call.1
$region0: #{tpu_custom_call.1}
  #allocation0 [shape = 'u32[]', space=smem, size = 0x4, offset = 0x4, fixed_abs, tag = 'smem constant byte address 0x4 - core index']
  #allocation1 [shape = 'u32[144,128]{1,0:T(1,128)}', space=vmem, size = 0x12000, scoped, tag = 'internal scratch']
  #allocation2 [shape = 'bf16[16,32]{1,0:T(16,128)(2,1)}', space=vmem, size = 0x1000, scoped, tag = 'scratch operand']
  #allocation3 [shape = 'f32[16,1]{1,0:T(8,128)}', space=vmem, size = 0x2000, scoped, tag = 'scratch operand']
  #allocation4 [shape = 'f32[16,1]{1,0:T(8,128)}', space=vmem, size = 0x2000, scoped, tag = 'scratch operand']
  #allocation5 [shape = 'f32[16,1]{1,0:T(8,128)}', space=vmem, size = 0x2000, scoped, tag = 'scratch operand']
  %s0 = inlined_call_operand.vmem [shape: f32[16,32], index: 0, kind: input, shape index: {}]
  %s1 = inlined_call_operand.vmem [shape: f32[1,32], index: 1, kind: input, shape index: {}]
  %s2 = inlined_call_operand.vmem [shape: bf16[256,32], index: 2, kind: input, shape index: {}]
  %s3 = inlined_call_operand.vmem [shape: s32[16,1], index: 3, kind: input, shape index: {}]
  %s4 = inlined_call_operand.vmem [shape: f32[16,1], index: 4, kind: output, shape index: {}]
  %s5 = sld [smem:[#allocation0]]
  $region57: #{tpu_custom_call.1} parent=0
    _
  %s7 = ssub.s32 1, %s5
  %s8 = scalar_select 0, %s7, %s5
  loop: start=0, step=1, limit=4
  $region2: #{tpu_custom_call.1} parent=0 // loop_pre_header
    _
  $region3: #{tpu_custom_call.1} parent=0 // loop_header
    %s10 = sphi 0, %s14
    %p11 = scmp.ge.s32.totalorder %s10, 4
    %s17 = sphi 0, %s29
    %s18 = sphi 0, %s25
    %s19 = sphi 0, %s17
    %s20 = sphi 0, %s18
    %s21 = sphi 0, %s19
    %s22 = sphi 0, %s20
    %s32 = sphi 0, %s34
    %s35 = sphi 0, %s32
    %s36 = sphi 0, %s35
    %s52 = sphi 0, %s36
    %s56 = sphi 0, %s56
    %s58 = sphi 0, %s56
    %s59 = sphi 0, %s58
    %s73 = sphi 0, %s59
    %s79 = sphi 0, %s81
    %s82 = sphi 0, %s79
    %s83 = sphi 0, %s82
    %s99 = sphi 0, %s83
    %s105 = sphi 0, %s107
    %s108 = sphi 0, %s105
    %s109 = sphi 0, %s108
    %s125 = sphi 0, %s109
    %s131 = sphi 0, %s133
    %s134 = sphi 0, %s131
    %s135 = sphi 0, %s134
    %s151 = sphi 0, %s135
  $region4: #{tpu_custom_call.1} parent=0 // loop_header_branch
    %13 = sbr.rel (%p11) target = $region8
  $region5: #{tpu_custom_call.1} parent=0 // loop_body
    %s15 = ssub.s32 %s10, 1
    %s16 = ssub.s32 %s10, 2
    %s23 = sadd.s32 1, %s18
    %p24 = scmp.ge.s32.totalorder %s23, 2
    %s25 = scalar_select %p24, 0, %s23
    %s26 = sadd.s32 1, %s17
    %s27 = scalar_select %p24, %s26, %s17
    %p28 = scmp.ge.s32.totalorder %s27, 1
    %s29 = scalar_select %p28, 0, %s27
    %s30 = ssub.s32 %s17, %s29
    %p31 = scmp.eq.s32.totalorder %s30, 0
    %s33 = sadd.s32 %s32, 1
    %s34 = scalar_select %p31, %s32, %s33
    %p37 = pneg %p31
    %p38 = scmp.eq.s32.totalorder %s10, 1
    %p39 = por %p37, %p38
    %p40 = scmp.ne.s32.totalorder %s32, %s35
    %p41 = scmp.eq.s32.totalorder %s10, 0
    %p42 = por %p40, %p41
    %p43 = scmp.ne.s32.totalorder %s32, %s35
    %p44 = scmp.eq.s32.totalorder %s15, 1
    %p45 = por %p43, %p44
    %p46 = scmp.ne.s32.totalorder %s35, %s36
    %p47 = scmp.eq.s32.totalorder %s15, 0
    %p48 = por %p46, %p47
    %p49 = scmp.ne.s32.totalorder %s35, %s36
    %p50 = scmp.eq.s32.totalorder %s16, 1
    %p51 = por %p49, %p50
    %p53 = scmp.ne.s32.totalorder %s36, %s52
    %p54 = scmp.eq.s32.totalorder %s16, 0
    %p55 = por %p53, %p54
    %s57 = sadd.s32 %s56, 1
    %p60 = scmp.eq.s32.totalorder %s10, 1
    %p61 = scmp.ne.s32.totalorder %s56, %s58
    %p62 = scmp.eq.s32.totalorder %s10, 0
    %p63 = por %p61, %p62
    %p64 = scmp.ne.s32.totalorder %s56, %s58
    %p65 = scmp.eq.s32.totalorder %s15, 1
    %p66 = por %p64, %p65
    %p67 = scmp.ne.s32.totalorder %s58, %s59
    %p68 = scmp.eq.s32.totalorder %s15, 0
    %p69 = por %p67, %p68
    %p70 = scmp.ne.s32.totalorder %s58, %s59
    %p71 = scmp.eq.s32.totalorder %s16, 1
    %p72 = por %p70, %p71
    %p74 = scmp.ne.s32.totalorder %s59, %s73
    %p75 = scmp.eq.s32.totalorder %s16, 0
    %p76 = por %p74, %p75
    %s77 = ssub.s32 %s18, %s25
    %p78 = scmp.eq.s32.totalorder %s77, 0
    %s80 = sadd.s32 %s79, 1
    %s81 = scalar_select %p78, %s79, %s80
    %p84 = pneg %p78
    %p85 = scmp.eq.s32.totalorder %s10, 1
    %p86 = por %p84, %p85
    %p87 = scmp.ne.s32.totalorder %s79, %s82
    %p88 = scmp.eq.s32.totalorder %s10, 0
    %p89 = por %p87, %p88
    %p90 = scmp.ne.s32.totalorder %s79, %s82
    %p91 = scmp.eq.s32.totalorder %s15, 1
    %p92 = por %p90, %p91
    %p93 = scmp.ne.s32.totalorder %s82, %s83
    %p94 = scmp.eq.s32.totalorder %s15, 0
    %p95 = por %p93, %p94
    %p96 = scmp.ne.s32.totalorder %s82, %s83
    %p97 = scmp.eq.s32.totalorder %s16, 1
    %p98 = por %p96, %p97
    %p100 = scmp.ne.s32.totalorder %s83, %s99
    %p101 = scmp.eq.s32.totalorder %s16, 0
    %p102 = por %p100, %p101
    %s103 = ssub.s32 %s17, %s29
    %p104 = scmp.eq.s32.totalorder %s103, 0
    %s106 = sadd.s32 %s105, 1
    %s107 = scalar_select %p104, %s105, %s106
    %p110 = pneg %p104
    %p111 = scmp.eq.s32.totalorder %s10, 1
    %p112 = por %p110, %p111
    %p113 = scmp.ne.s32.totalorder %s105, %s108
    %p114 = scmp.eq.s32.totalorder %s10, 0
    %p115 = por %p113, %p114
    %p116 = scmp.ne.s32.totalorder %s105, %s108
    %p117 = scmp.eq.s32.totalorder %s15, 1
    %p118 = por %p116, %p117
    %p119 = scmp.ne.s32.totalorder %s108, %s109
    %p120 = scmp.eq.s32.totalorder %s15, 0
    %p121 = por %p119, %p120
    %p122 = scmp.ne.s32.totalorder %s108, %s109
    %p123 = scmp.eq.s32.totalorder %s16, 1
    %p124 = por %p122, %p123
    %p126 = scmp.ne.s32.totalorder %s109, %s125
    %p127 = scmp.eq.s32.totalorder %s16, 0
    %p128 = por %p126, %p127
    %s129 = ssub.s32 %s17, %s29
    %p130 = scmp.eq.s32.totalorder %s129, 0
    %s132 = sadd.s32 %s131, 1
    %s133 = scalar_select %p130, %s131, %s132
    %p136 = pneg %p130
    %p137 = scmp.eq.s32.totalorder %s10, 1
    %p138 = por %p136, %p137
    %p139 = scmp.ne.s32.totalorder %s131, %s134
    %p140 = scmp.eq.s32.totalorder %s10, 0
    %p141 = por %p139, %p140
    %p142 = scmp.ne.s32.totalorder %s131, %s134
    %p143 = scmp.eq.s32.totalorder %s15, 1
    %p144 = por %p142, %p143
    %p145 = scmp.ne.s32.totalorder %s134, %s135
    %p146 = scmp.eq.s32.totalorder %s15, 0
    %p147 = por %p145, %p146
    %p148 = scmp.ne.s32.totalorder %s134, %s135
    %p149 = scmp.eq.s32.totalorder %s16, 1
    %p150 = por %p148, %p149
    %p152 = scmp.ne.s32.totalorder %s135, %s151
    %p153 = scmp.eq.s32.totalorder %s16, 0
    %p154 = por %p152, %p153
    %p155 = scmp.le.s32.totalorder 1, %s10
    %p156 = scmp.lt.s32.totalorder %s10, 3
    %p157 = pnand %p155, %p156
    %p158 = pneg %p157
    // Predicated region
    $region9: #{tpu_custom_call.1} parent=5 // pred_check
      _
    $region10: #{tpu_custom_call.1} parent=5 // pred_check_branch
      %160 = sbr.rel (%p157) target = $region12
    $region11: #{tpu_custom_call.1} parent=5 // pred_region
      %s161 = ssub.s32 %s10, 1
      // Predicated region
      $region13: #{tpu_custom_call.1} parent=11 // pred_check
        %p162 = pneg %p48
      $region14: #{tpu_custom_call.1} parent=11 // pred_check_branch
        %164 = sbr.rel (%p162) target = $region16
      $region15: #{tpu_custom_call.1} parent=11 // pred_region
        %s165 = smul.u32 2, %s19
        %p166 = scmp.lt.s32.totalorder %s165, 1
        %s167 = scalar_select %p166, %s165, 1
        %s168 = smul.addr %s167, 8
        %s169 = scalar_lea.vmem %s0, %s168
        %s170 = smul.u32 2, %s19
      $region16: #{tpu_custom_call.1} parent=11 // pred_fallthru
        _
      // Predicated region
      $region17: #{tpu_custom_call.1} parent=11 // pred_check
        %p171 = pneg %p69
      $region18: #{tpu_custom_call.1} parent=11 // pred_check_branch
        %173 = sbr.rel (%p171) target = $region20
      $region19: #{tpu_custom_call.1} parent=11 // pred_region
        _
      $region20: #{tpu_custom_call.1} parent=11 // pred_fallthru
        _
      // Predicated region
      $region21: #{tpu_custom_call.1} parent=11 // pred_check
        %p174 = pneg %p121
      $region22: #{tpu_custom_call.1} parent=11 // pred_check_branch
        %176 = sbr.rel (%p174) target = $region24
      $region23: #{tpu_custom_call.1} parent=11 // pred_region
        %s177 = smul.u32 2, %s19
        %p178 = scmp.lt.s32.totalorder %s177, 1
        %s179 = scalar_select %p178, %s177, 1
        %s180 = smul.addr %s179, 8
        %s181 = scalar_lea.vmem %s3, %s180
        %s182 = smul.u32 2, %s19
      $region24: #{tpu_custom_call.1} parent=11 // pred_fallthru
        _
    $region12: #{tpu_custom_call.1} parent=5 // pred_fallthru
      _
    %p183 = scmp.lt.s32.totalorder %s10, 2
    // Predicated region
    $region25: #{tpu_custom_call.1} parent=5 // pred_check
      %p184 = pneg %p183
    $region26: #{tpu_custom_call.1} parent=5 // pred_check_branch
      %186 = sbr.rel (%p184) target = $region28
    $region27: #{tpu_custom_call.1} parent=5 // pred_region
      // Predicated region
      $region29: #{tpu_custom_call.1} parent=27 // pred_check
        %p187 = pneg %p89
      $region30: #{tpu_custom_call.1} parent=27 // pred_check_branch
        %189 = sbr.rel (%p187) target = $region32
      $region31: #{tpu_custom_call.1} parent=27 // pred_region
        %s190 = smul.u32 16, %s18
        %p191 = scmp.lt.s32.totalorder %s190, 31
        %s192 = scalar_select %p191, %s190, 31
        %s193 = smul.addr %s192, 4
        %s194 = scalar_lea.vmem %s2, %s193
        %s195 = smul.u32 16, %s18
      $region32: #{tpu_custom_call.1} parent=27 // pred_fallthru
        _
    $region28: #{tpu_custom_call.1} parent=5 // pred_fallthru
      _
    %p196 = scmp.le.s32.totalorder 1, %s10
    %p197 = scmp.lt.s32.totalorder %s10, 3
    %p198 = pnand %p196, %p197
    %p199 = pneg %p198
    // Predicated region
    $region33: #{tpu_custom_call.1} parent=5 // pred_check
      _
    $region34: #{tpu_custom_call.1} parent=5 // pred_check_branch
      %201 = sbr.rel (%p198) target = $region36
    $region35: #{tpu_custom_call.1} parent=5 // pred_region
      %s202 = ssub.s32 %s10, 1
      %s203 = smul.u32 2, %s19
      %p204 = scmp.lt.s32.totalorder %s203, 1
      %s205 = scalar_select %p204, %s203, 1
      %s206 = smul.addr %s205, 8
      %s207 = scalar_lea.vmem %s0, %s206
      %p208 = pneg %p48
      %p209 = pneg %p45
      %p210 = pneg %p69
      %p211 = pneg %p66
      %s212 = smul.u32 16, %s20
      %p213 = scmp.lt.s32.totalorder %s212, 31
      %s214 = scalar_select %p213, %s212, 31
      %s215 = smul.addr %s214, 4
      %s216 = scalar_lea.vmem %s2, %s215
      %p217 = pneg %p95
      %p218 = pneg %p92
      %s219 = smul.u32 2, %s19
      %p220 = scmp.lt.s32.totalorder %s219, 1
      %s221 = scalar_select %p220, %s219, 1
      %s222 = smul.addr %s221, 8
      %s223 = scalar_lea.vmem %s3, %s222
      %p224 = pneg %p121
      %p225 = pneg %p118
      %p226 = pneg %p147
      %p227 = pneg %p144
      %s228 = smul.u32 2, %s19
      %p229 = scmp.lt.s32.totalorder %s228, 1
      %s230 = scalar_select %p229, %s228, 1
      %s231 = smul.addr %s230, 8
      %s232 = scalar_lea.vmem %s4, %s231
      %s233 = smul.u32 2, %s19
      %p234 = scmp.lt.s32.totalorder %s233, 1
      %s235 = scalar_select %p234, %s233, 1
      %s236 = smul.addr %s235, 8
      %s237 = scalar_lea.vmem %s0, %s236
      %s238 = smul.u32 2, %s19
      %s239 = smul.u32 16, %s20
      %p240 = scmp.lt.s32.totalorder %s239, 31
      %s241 = scalar_select %p240, %s239, 31
      %s242 = smul.addr %s241, 4
      %s243 = scalar_lea.vmem %s2, %s242
      %s244 = smul.u32 16, %s20
      %s245 = smul.u32 2, %s19
      %p246 = scmp.lt.s32.totalorder %s245, 1
      %s247 = scalar_select %p246, %s245, 1
      %s248 = smul.addr %s247, 8
      %s249 = scalar_lea.vmem %s3, %s248
      %s250 = smul.u32 2, %s19
      %s251 = smul.u32 2, %s19
      %p252 = scmp.lt.s32.totalorder %s251, 1
      %s253 = scalar_select %p252, %s251, 1
      %s254 = smul.addr %s253, 8
      %s255 = scalar_lea.vmem %s4, %s254
      %s256 = smul.u32 2, %s19
      %p258 = scmp.eq.s32.totalorder %s20, 0
      // Predicated region
      $region37: #{tpu_custom_call.1} parent=35 // pred_check
        %p259 = pneg %p258
      $region38: #{tpu_custom_call.1} parent=35 // pred_check_branch
        %261 = sbr.rel (%p259) target = $region40
      $region39: #{tpu_custom_call.1} parent=35 // pred_region
        %v262 = vld [vmem:[%s237] sm:$0xff]
        %v263 = vld [vmem:[%s237 + $0x8] sm:$0xff]
        %v264 = vmul.f32 %v262, %v262
        %v265 = vmul.f32 %v263, %v263
        %vm266 = vcmask 261120
        %v267 = vsel %vm266, %v264, 0.0
        %268 = vadd.xlane.f32.xlu0 %v267
        %v269 = vpop.xlane.xlu0 %268
        %v270 = vsel %vm266, %v265, 0.0
        %271 = vadd.xlane.f32.xlu0 %v270
        %v272 = vpop.xlane.xlu0 %271
        %v273 = vrcp.pop 32.0
        %v274 = vmul.f32 %v269, %v273
        %v275 = vmul.f32 %v272, %v273
        %v276 = vadd.f32 %v274, 1e-05
        %v277 = vadd.f32 %v275, 1e-05
        %v278 = vrsqrt.pop %v276
        %v279 = vrsqrt.pop %v277
        %v280 = vmul.f32 %v262, %v278
        %v281 = vmul.f32 %v263, %v279
        %v282 = vld [vmem:[%s1] sm:$0x1]
        %v284 = vlaneseq
        %v285 = vshrl.u32 %v284, 7
        %v286 = vsub.s32 0, %v285
        %v287 = vrot.slane %v282, %v286
        %v289 = vmul.f32 %v280, %v287
        %v290 = vmul.f32 %v281, %v287
        %v291 = vpack.c.bf16 %v290, %v289
        %292 = vst.msk [vmem:[#allocation2] sm:$0xff] %vm266, %v291
        %vm293 = vcmask 7168
        %294 = vst.msk [vmem:[#allocation3] sm:$0xff] %vm293, -inf
        %295 = vst.msk [vmem:[#allocation3 + $0x8] sm:$0xff] %vm293, -inf
        %296 = vst.msk [vmem:[#allocation4] sm:$0xff] %vm293, 0.0
        %297 = vst.msk [vmem:[#allocation4 + $0x8] sm:$0xff] %vm293, 0.0
        %298 = vst.msk [vmem:[#allocation5] sm:$0xff] %vm293, 0.0
        %299 = vst.msk [vmem:[#allocation5 + $0x8] sm:$0xff] %vm293, 0.0
      $region40: #{tpu_custom_call.1} parent=35 // pred_fallthru
        _
      %v300 = vld [vmem:[#allocation2] sm:$0xff]
      %v301 = vld [vmem:[%s243] sm:$0xf]
      %v302 = vld [vmem:[%s243 + $0x4] sm:$0xf]
      %v303 = vld [vmem:[%s243 + $0x8] sm:$0xf]
      %v304 = vld [vmem:[%s243 + $0xc] sm:$0xf]
      %v305 = vld [vmem:[%s243 + $0x10] sm:$0xf]
      %v306 = vld [vmem:[%s243 + $0x14] sm:$0xf]
      %v307 = vld [vmem:[%s243 + $0x18] sm:$0xf]
      %v308 = vld [vmem:[%s243 + $0x1c] sm:$0xf]
      %v309 = vld [vmem:[%s243 + $0x20] sm:$0xf]
      %v310 = vld [vmem:[%s243 + $0x24] sm:$0xf]
      %v311 = vld [vmem:[%s243 + $0x28] sm:$0xf]
      %v312 = vld [vmem:[%s243 + $0x2c] sm:$0xf]
      %v313 = vld [vmem:[%s243 + $0x30] sm:$0xf]
      %v314 = vld [vmem:[%s243 + $0x34] sm:$0xf]
      %v315 = vld [vmem:[%s243 + $0x38] sm:$0xf]
      %v316 = vld [vmem:[%s243 + $0x3c] sm:$0xf]
      %v333 = vunpack.c.l.b16 %v301
      %v334 = vunpack.c.l.b16 %v302
      %v335 = vunpack.c.l.b16 %v303
      %v336 = vunpack.c.l.b16 %v304
      %v337 = vunpack.c.l.b16 %v305
      %v338 = vunpack.c.l.b16 %v306
      %v339 = vunpack.c.l.b16 %v307
      %v340 = vunpack.c.l.b16 %v308
      %v341 = vunpack.c.l.b16 %v309
      %v342 = vunpack.c.l.b16 %v310
      %v343 = vunpack.c.l.b16 %v311
      %v344 = vunpack.c.l.b16 %v312
      %v345 = vunpack.c.l.b16 %v313
      %v346 = vunpack.c.l.b16 %v314
      %v347 = vunpack.c.l.b16 %v315
      %v348 = vunpack.c.l.b16 %v316
      %v349 = vpack.c.b16 %v334, %v333
      %v350 = vpack.c.b16 %v336, %v335
      %v351 = vpack.c.b16 %v338, %v337
      %v352 = vpack.c.b16 %v340, %v339
      %v353 = vpack.c.b16 %v342, %v341
      %v354 = vpack.c.b16 %v344, %v343
      %v355 = vpack.c.b16 %v346, %v345
      %v356 = vpack.c.b16 %v348, %v347
      %vm357 = vcmask 261120
      %v359 = vsel %vm357, %v300, 0
      %v362 = vsel %vm357, %v349, 0
      %v365 = vsel %vm357, %v350, 0
      %v368 = vsel %vm357, %v351, 0
      %v371 = vsel %vm357, %v352, 0
      %v374 = vsel %vm357, %v353, 0
      %v377 = vsel %vm357, %v354, 0
      %v380 = vsel %vm357, %v355, 0
      %v383 = vsel %vm357, %v356, 0
      %385 = vmatprep.subr.bf16.mxu0 0
      %386 = vmatpush1.bf16.xpose.msra.mxu0 %v362
      %387 = vmatprep.subr.bf16.mxu0 0
      %388 = vmatpush1.bf16.xpose.msra.mxu0 %v365
      %389 = vmatprep.subr.bf16.mxu0 0
      %390 = vmatpush1.bf16.xpose.msra.mxu0 %v368
      %391 = vmatprep.subr.bf16.mxu0 0
      %392 = vmatpush1.bf16.xpose.msra.mxu0 %v371
      %393 = vmatprep.subr.bf16.mxu0 0
      %394 = vmatpush1.bf16.xpose.msra.mxu0 %v374
      %395 = vmatprep.subr.bf16.mxu0 0
      %396 = vmatpush1.bf16.xpose.msra.mxu0 %v377
      %397 = vmatprep.subr.bf16.mxu0 0
      %398 = vmatpush1.bf16.xpose.msra.mxu0 %v380
      %399 = vmatprep.subr.bf16.mxu0 0
      %400 = vmatpush1.bf16.xpose.msra.mxu0 %v383
      %401 = vmatprep.subr.bf16.mxu0 0
      %402 = vmatpush1.bf16.xpose.msra.mxu0 0
      %403 = vmatprep.subr.bf16.mxu0 0
      %404 = vmatpush1.bf16.xpose.msra.mxu0 0
      %405 = vmatprep.subr.bf16.mxu0 0
      %406 = vmatpush1.bf16.xpose.msra.mxu0 0
      %407 = vmatprep.subr.bf16.mxu0 0
      %408 = vmatpush1.bf16.xpose.msra.mxu0 0
      %409 = vmatprep.subr.bf16.mxu0 0
      %410 = vmatpush1.bf16.xpose.msra.mxu0 0
      %411 = vmatprep.subr.bf16.mxu0 0
      %412 = vmatpush1.bf16.xpose.msra.mxu0 0
      %413 = vmatprep.subr.bf16.mxu0 0
      %414 = vmatpush1.bf16.xpose.msra.mxu0 0
      %415 = vmatprep.subr.bf16.mxu0 0
      %416 = vmatpush1.bf16.xpose.msra.mxu0 0
      %417 = vmatprep.mubr.bf16.mxu0 0
      %418 = vmatmul.mubr.bf16.gmra.mrb[0].mxu0 %v359
      %v419 = vpop.f32.mrb[0].mxu0
      %v420 = vadd.f32 0.0, %v419
      %v421 = vpop.f32.mrb[0].mxu0
      %v422 = vpop.f32.mrb[0].mxu0
      %v423 = vadd.f32 0.0, %v422
      %v424 = vpop.f32.mrb[0].mxu0
      %425 = vdwg.mxu0
      %v426 = vlaneseq
      %v427 = vand.u32 %v426, 127
      %s428 = smul.u32 %s20, 128
      %v429 = vstv %s428
      %v430 = vadd.s32 %v427, %v429
      %v431 = vld [vmem:[#allocation3] sm:$0xff]
      %v432 = vld [vmem:[#allocation3 + $0x8] sm:$0xff]
      %433 = vmax.xlane.f32.xlu0 %v420
      %v434 = vpop.xlane.xlu0 %433
      %435 = vmax.xlane.f32.xlu0 %v423
      %v436 = vpop.xlane.xlu0 %435
      %v437 = vmax.f32 %v431, %v434
      %v438 = vmax.f32 %v432, %v436
      %v439 = vsub.f32 %v431, %v437
      %v440 = vsub.f32 %v432, %v438
      %v441 = vmul.f32 %v439, 1.442695
      %v442 = vpow.pop %v441
      %v443 = vmul.f32 %v440, 1.442695
      %v444 = vpow.pop %v443
      %v445 = vld [vmem:[#allocation4] sm:$0xff]
      %v446 = vld [vmem:[#allocation4 + $0x8] sm:$0xff]
      %v447 = vmul.f32 %v442, %v445
      %v448 = vmul.f32 %v444, %v446
      %450 = vset.pattern.permute.xlu0 0
      %451 = vperm.xlu0 %450, %v437
      %v452 = vpop.permute.xlu0 %451
      %455 = vset.pattern.permute.xlu0 0
      %456 = vperm.xlu0 %455, %v438
      %v457 = vpop.permute.xlu0 %456
      %v459 = vsub.f32 %v420, %v452
      %v460 = vsub.f32 %v423, %v457
      %v461 = vmul.f32 %v459, 1.442695
      %v462 = vpow.pop %v461
      %v463 = vmul.f32 %v460, 1.442695
      %v464 = vpow.pop %v463
      %465 = vadd.xlane.f32.xlu0 %v462
      %v466 = vpop.xlane.xlu0 %465
      %467 = vadd.xlane.f32.xlu0 %v464
      %v468 = vpop.xlane.xlu0 %467
      %v469 = vadd.f32 %v447, %v466
      %v470 = vadd.f32 %v448, %v468
      %vm471 = vcmask 7168
      %472 = vst.msk [vmem:[#allocation4] sm:$0xff] %vm471, %v469
      %473 = vst.msk [vmem:[#allocation4 + $0x8] sm:$0xff] %vm471, %v470
      %474 = vst.msk [vmem:[#allocation3] sm:$0xff] %vm471, %v437
      %475 = vst.msk [vmem:[#allocation3 + $0x8] sm:$0xff] %vm471, %v438
      %v476 = vld [vmem:[#allocation5] sm:$0xff]
      %v477 = vld [vmem:[#allocation5 + $0x8] sm:$0xff]
      %v478 = vld [vmem:[%s249] sm:$0xff]
      %v479 = vld [vmem:[%s249 + $0x8] sm:$0xff]
      %480 = vset.pattern.permute.xlu0 0
      %481 = vperm.xlu0 %480, %v478
      %v482 = vpop.permute.xlu0 %481
      %483 = vset.pattern.permute.xlu0 0
      %484 = vperm.xlu0 %483, %v479
      %v485 = vpop.permute.xlu0 %484
      %vm486 = vcmp.eq.s32.totalorder %v430, %v482
      %vm487 = vcmp.eq.s32.totalorder %v430, %v485
      %v488 = vsel %vm486, %v420, 0.0
      %v489 = vsel %vm487, %v423, 0.0
      %490 = vadd.xlane.f32.xlu0 %v488
      %v491 = vpop.xlane.xlu0 %490
      %492 = vadd.xlane.f32.xlu0 %v489
      %v493 = vpop.xlane.xlu0 %492
      %v494 = vadd.f32 %v476, %v491
      %v495 = vadd.f32 %v477, %v493
      %496 = vst.msk [vmem:[#allocation5] sm:$0xff] %vm471, %v494
      %497 = vst.msk [vmem:[#allocation5 + $0x8] sm:$0xff] %vm471, %v495
      %p498 = scmp.eq.s32.totalorder %s20, 1
      // Predicated region
      $region41: #{tpu_custom_call.1} parent=35 // pred_check
        %p499 = pneg %p498
      $region42: #{tpu_custom_call.1} parent=35 // pred_check_branch
        %501 = sbr.rel (%p499) target = $region44
      $region43: #{tpu_custom_call.1} parent=35 // pred_region
        %v502 = vld [vmem:[#allocation3] sm:$0xff]
        %v503 = vld [vmem:[#allocation3 + $0x8] sm:$0xff]
        %v504 = vld [vmem:[#allocation4] sm:$0xff]
        %v505 = vld [vmem:[#allocation4 + $0x8] sm:$0xff]
        %v506 = vlog2.pop %v504
        %v507 = vmul.f32 %v506, 0.6931472
        %v508 = vlog2.pop %v505
        %v509 = vmul.f32 %v508, 0.6931472
        %v510 = vadd.f32 %v502, %v507
        %v511 = vadd.f32 %v503, %v509
        %v512 = vld [vmem:[#allocation5] sm:$0xff]
        %v513 = vld [vmem:[#allocation5 + $0x8] sm:$0xff]
        %v514 = vsub.f32 %v510, %v512
        %v515 = vsub.f32 %v511, %v513
        %516 = vst.msk [vmem:[%s255] sm:$0xff] %vm471, %v514
        %517 = vst.msk [vmem:[%s255 + $0x8] sm:$0xff] %vm471, %v515
      $region44: #{tpu_custom_call.1} parent=35 // pred_fallthru
        _
      %s518 = smul.u32 2, %s19
      %p519 = scmp.lt.s32.totalorder %s518, 1
      %s520 = scalar_select %p519, %s518, 1
      %s521 = smul.addr %s520, 8
      %s522 = scalar_lea.vmem %s4, %s521
      // Predicated region
      $region45: #{tpu_custom_call.1} parent=35 // pred_check
        %p523 = pneg %p144
      $region46: #{tpu_custom_call.1} parent=35 // pred_check_branch
        %525 = sbr.rel (%p523) target = $region48
      $region47: #{tpu_custom_call.1} parent=35 // pred_region
        %s526 = smul.u32 2, %s19
      $region48: #{tpu_custom_call.1} parent=35 // pred_fallthru
        _
      // Predicated region
      $region49: #{tpu_custom_call.1} parent=35 // pred_check
        %p527 = pneg %p144
      $region50: #{tpu_custom_call.1} parent=35 // pred_check_branch
        %529 = sbr.rel (%p527) target = $region52
      $region51: #{tpu_custom_call.1} parent=35 // pred_region
        %s530 = smul.u32 2, %s19
        %p531 = scmp.lt.s32.totalorder %s530, 1
        %s532 = scalar_select %p531, %s530, 1
        %s533 = smul.addr %s532, 8
        %s534 = scalar_lea.vmem %s4, %s533
      $region52: #{tpu_custom_call.1} parent=35 // pred_fallthru
        _
    $region36: #{tpu_custom_call.1} parent=5 // pred_fallthru
      _
    %p535 = scmp.le.s32.totalorder 2, %s10
    // Predicated region
    $region53: #{tpu_custom_call.1} parent=5 // pred_check
      %p536 = pneg %p535
    $region54: #{tpu_custom_call.1} parent=5 // pred_check_branch
      %538 = sbr.rel (%p536) target = $region56
    $region55: #{tpu_custom_call.1} parent=5 // pred_region
      %s539 = ssub.s32 %s10, 2
    $region56: #{tpu_custom_call.1} parent=5 // pred_fallthru
      _
  $region6: #{tpu_custom_call.1} parent=0 // loop_footer
    %s14 = sadd.s32 1, %s10
  $region7: #{tpu_custom_call.1} parent=0 // loop_footer_branch
    %9 = sbr.rel target = $region3
  $region8: #{tpu_custom_call.1} parent=0 // loop_exit
    _

</llo_original>
